<compile_context>
chip_gen: v7x
topology: tpu7x:2x2x1
jax: 0.10.0
libtpu: 0.0.40
codegen_flags: <defaults>
</compile_context>

<pallas_src>
import jax
import jax.numpy as jnp
from jax.experimental import pallas as pl
from jax.experimental.pallas import tpu as pltpu

N_IN, N_H1, N_H2, N_OUT = 8, 6, 4, 1
LANES = 128            # vreg lane width
SUB = 8                # vreg sublanes -> one (8,128) chunk = 1024 batch elems
CHUNK = SUB * LANES


def mlp_kernel(x_ref, w1_ref, b1_ref, w2_ref, b2_ref, w3_ref, b3_ref, o_ref):
    """x_ref: VMEM [8, S, 128] f32 (feature, sublane-block, lane), batch dense.
    o_ref: VMEM [S, 128] f32.  w*/b*: SMEM, PRE-NEGATED [out,in] / [out]."""
    s_total = x_ref.shape[1]
    num_chunks = s_total // SUB

    def dense_sigmoid_layer(h, w_ref, b_ref):
        # h: list of n_in dense [SUB,128] slabs -> list of n_out slabs.
        n_out, n_in = w_ref.shape
        outs = []
        for j in range(n_out):
            # Scalar (SMEM) x vector FMAs on the VPU; weights are pre-negated,
            # so this accumulates z = -(W h + b) with no trailing negate.
            acc = h[0] * w_ref[j, 0]
            for k in range(1, n_in):
                acc = acc + h[k] * w_ref[j, k]
            z = acc + b_ref[j]
            # sigmoid(Wh+b) = 1 / (1 + exp(z)); exp + approx recip -> EUP slot.
            outs.append(pl.reciprocal(1.0 + jnp.exp(z), approx=True))
        return outs

    # Inner loop over 8x128 chunks: big grid tiles for DMA/overhead amortization,
    # small live set (< ~40 vregs) per iteration.
    @pl.loop(0, num_chunks)
    def _(c):
        off = pl.multiple_of(c * SUB, SUB)
        h = [x_ref[k, pl.ds(off, SUB), :] for k in range(N_IN)]   # 8 x [SUB,128]
        h = dense_sigmoid_layer(h, w1_ref, b1_ref)                # 6 x [SUB,128]
        h = dense_sigmoid_layer(h, w2_ref, b2_ref)                # 4 x [SUB,128]
        h = dense_sigmoid_layer(h, w3_ref, b3_ref)                # 1 x [SUB,128]
        o_ref[pl.ds(off, SUB), :] = h[0]


def mlp_forward(x, params, tb=64 * 1024):
    """x: [B, 8] f32 (PyTorch Linear layout). Returns [B, 1] f32."""
    w1, b1, w2, b2, w3, b3 = params
    B = x.shape[0]

    # ---- batch tile size: multiple of 1024, large, but >=2 tiles when the
    # batch allows it so the 'parallel' axis feeds both v7x TensorCores.
    tb = max(CHUNK, (int(tb) // CHUNK) * CHUNK)
    two_tile = pl.cdiv(B, 2 * CHUNK) * CHUNK
    tb = min(tb, max(CHUNK, two_tile))
    n_tiles = pl.cdiv(B, tb)
    b_pad = n_tiles * tb
    S = tb // LANES                  # sublane-blocks per tile
    NB = b_pad // LANES              # total sublane-blocks

    # ---- repack to dense [feature, sublane, lane]: one fused pad+transpose
    # copy (reshape is a bitcast); batch index b -> (b // 128, b % 128).
    # TODO(synk): fuse this transpose into the upstream producer of x to drop
    # the extra HBM round-trip entirely.
    xp = jnp.pad(x.astype(jnp.float32), ((0, b_pad - B), (0, 0)))   # [b_pad, 8]
    xt = xp.T.reshape(N_IN, NB, LANES)                              # [8, NB, 128]

    # ---- pre-negate the tiny weights/biases once (wrapper-side, ~80 floats).
    neg = [(-p).astype(jnp.float32) for p in (w1, b1, w2, b2, w3, b3)]

    smem_spec = pl.BlockSpec(memory_space=pltpu.MemorySpace.SMEM)

    out = pl.pallas_call(
        mlp_kernel,
        out_shape=jax.ShapeDtypeStruct((NB, LANES), jnp.float32),
        grid=(n_tiles,),
        in_specs=[
            pl.BlockSpec((N_IN, S, LANES), lambda i: (0, i, 0)),   # dense batch tile
            smem_spec, smem_spec,                                  # -w1, -b1
            smem_spec, smem_spec,                                  # -w2, -b2
            smem_spec, smem_spec,                                  # -w3, -b3
        ],
        out_specs=pl.BlockSpec((S, LANES), lambda i: (i, 0)),      # dense output tile
        compiler_params=pltpu.CompilerParams(
            dimension_semantics=("parallel",),   # shard batch tiles across TCs
        ),
    )(xt, *neg)

    return out.reshape(b_pad)[:B].reshape(B, 1)


def init_params(key):
    # torch.nn.Linear default init (uniform +-1/sqrt(fan_in)), torch layout [out, in].
    def linear(k, fan_in, fan_out):
        kw, kb = jax.random.split(k)
        bound = 1.0 / (fan_in ** 0.5)
        w = jax.random.uniform(kw, (fan_out, fan_in), jnp.float32, -bound, bound)
        b = jax.random.uniform(kb, (fan_out,), jnp.float32, -bound, bound)
        return w, b

    k1, k2, k3 = jax.random.split(key, 3)
    w1, b1 = linear(k1, N_IN, N_H1)
    w2, b2 = linear(k2, N_H1, N_H2)
    w3, b3 = linear(k3, N_H2, N_OUT)
    return (w1, b1, w2, b2, w3, b3)


def _reference(x, params):
    w1, b1, w2, b2, w3, b3 = params
    h = jax.nn.sigmoid(x @ w1.T + b1)
    h = jax.nn.sigmoid(h @ w2.T + b2)
    return jax.nn.sigmoid(h @ w3.T + b3)


if __name__ == "__main__":
    key = jax.random.PRNGKey(0)
    kx1, kx2, kp = jax.random.split(key, 3)
    params = init_params(kp)

    # Small case matching the PyTorch module's expected [B, 8] input.
    B = 8
    x = jax.random.normal(kx1, (B, N_IN), jnp.float32)
    out = jax.block_until_ready(mlp_forward(x, params))
    ref = _reference(x, params)
    assert out.shape == (B, 1)
    assert jnp.allclose(out, ref, atol=2e-3, rtol=2e-3), float(jnp.max(jnp.abs(out - ref)))

    # Non-divisible batch: exercises padding, multiple grid tiles (2-tile
    # 'parallel' axis) and multiple inner 8x128 chunks per tile.
    B2 = 2500
    x2 = jax.random.normal(kx2, (B2, N_IN), jnp.float32)
    out2 = jax.block_until_ready(mlp_forward(x2, params))
    ref2 = _reference(x2, params)
    assert out2.shape == (B2, 1)
    assert jnp.allclose(out2, ref2, atol=2e-3, rtol=2e-3), float(jnp.max(jnp.abs(out2 - ref2)))

    print("KERNEL_OK")
</pallas_src>

<mosaic_0001>
module attributes {stable_mosaic.version = 11 : i64} {
  func.func @mlp_kernel(%arg0: i32, %arg1: memref<8x8x128xf32, #tpu.memory_space<vmem>>, %arg2: memref<6x8xf32, #tpu.memory_space<smem>>, %arg3: memref<6xf32, #tpu.memory_space<smem>>, %arg4: memref<4x6xf32, #tpu.memory_space<smem>>, %arg5: memref<4xf32, #tpu.memory_space<smem>>, %arg6: memref<1x4xf32, #tpu.memory_space<smem>>, %arg7: memref<1xf32, #tpu.memory_space<smem>>, %arg8: memref<8x128xf32, #tpu.memory_space<vmem>>) attributes {dimension_semantics = [#tpu.dimension_semantics<parallel>], iteration_bounds = array<i64: 1>, scalar_prefetch = 0 : i64, scratch_operands = 0 : i64, tpu.core_type = #tpu.core_type<tc>, window_params = [{transform_indices = @transform_0, window_bounds = array<i64: 8, 8, 128>}, {transform_indices = @transform_1, window_bounds = array<i64: 6, 8>}, {transform_indices = @transform_2, window_bounds = array<i64: 6>}, {transform_indices = @transform_3, window_bounds = array<i64: 4, 6>}, {transform_indices = @transform_4, window_bounds = array<i64: 4>}, {transform_indices = @transform_5, window_bounds = array<i64: 1, 4>}, {transform_indices = @transform_6, window_bounds = array<i64: 1>}, {transform_indices = @transform_7, window_bounds = array<i64: 8, 128>}]} {
    %c0_i32 = arith.constant 0 : i32
    %c1_i32 = arith.constant 1 : i32
    %0 = arith.muli %c0_i32, %c1_i32 : i32
    %c0_i32_0 = arith.constant 0 : i32
    %1 = arith.addi %c0_i32_0, %0 : i32
    %c8_i32 = arith.constant 8 : i32
    %2 = arith.muli %1, %c8_i32 : i32
    %3 = tpu.assume_multiple %2, 8 : i32
    %c0 = arith.constant 0 : index
    %4 = arith.index_cast %3 : i32 to index
    %c0_1 = arith.constant 0 : index
    %5 = vector.load %arg1[%c0, %4, %c0_1] : memref<8x8x128xf32, #tpu.memory_space<vmem>>, vector<1x8x128xf32>
    %6 = vector.shape_cast %5 : vector<1x8x128xf32> to vector<8x128xf32>
    %c1 = arith.constant 1 : index
    %7 = arith.index_cast %3 : i32 to index
    %c0_2 = arith.constant 0 : index
    %8 = vector.load %arg1[%c1, %7, %c0_2] : memref<8x8x128xf32, #tpu.memory_space<vmem>>, vector<1x8x128xf32>
    %9 = vector.shape_cast %8 : vector<1x8x128xf32> to vector<8x128xf32>
    %c2 = arith.constant 2 : index
    %10 = arith.index_cast %3 : i32 to index
    %c0_3 = arith.constant 0 : index
    %11 = vector.load %arg1[%c2, %10, %c0_3] : memref<8x8x128xf32, #tpu.memory_space<vmem>>, vector<1x8x128xf32>
    %12 = vector.shape_cast %11 : vector<1x8x128xf32> to vector<8x128xf32>
    %c3 = arith.constant 3 : index
    %13 = arith.index_cast %3 : i32 to index
    %c0_4 = arith.constant 0 : index
    %14 = vector.load %arg1[%c3, %13, %c0_4] : memref<8x8x128xf32, #tpu.memory_space<vmem>>, vector<1x8x128xf32>
    %15 = vector.shape_cast %14 : vector<1x8x128xf32> to vector<8x128xf32>
    %c4 = arith.constant 4 : index
    %16 = arith.index_cast %3 : i32 to index
    %c0_5 = arith.constant 0 : index
    %17 = vector.load %arg1[%c4, %16, %c0_5] : memref<8x8x128xf32, #tpu.memory_space<vmem>>, vector<1x8x128xf32>
    %18 = vector.shape_cast %17 : vector<1x8x128xf32> to vector<8x128xf32>
    %c5 = arith.constant 5 : index
    %19 = arith.index_cast %3 : i32 to index
    %c0_6 = arith.constant 0 : index
    %20 = vector.load %arg1[%c5, %19, %c0_6] : memref<8x8x128xf32, #tpu.memory_space<vmem>>, vector<1x8x128xf32>
    %21 = vector.shape_cast %20 : vector<1x8x128xf32> to vector<8x128xf32>
    %c6 = arith.constant 6 : index
    %22 = arith.index_cast %3 : i32 to index
    %c0_7 = arith.constant 0 : index
    %23 = vector.load %arg1[%c6, %22, %c0_7] : memref<8x8x128xf32, #tpu.memory_space<vmem>>, vector<1x8x128xf32>
    %24 = vector.shape_cast %23 : vector<1x8x128xf32> to vector<8x128xf32>
    %c7 = arith.constant 7 : index
    %25 = arith.index_cast %3 : i32 to index
    %c0_8 = arith.constant 0 : index
    %26 = vector.load %arg1[%c7, %25, %c0_8] : memref<8x8x128xf32, #tpu.memory_space<vmem>>, vector<1x8x128xf32>
    %27 = vector.shape_cast %26 : vector<1x8x128xf32> to vector<8x128xf32>
    %c0_9 = arith.constant 0 : index
    %c0_10 = arith.constant 0 : index
    %28 = memref.load %arg2[%c0_9, %c0_10] : memref<6x8xf32, #tpu.memory_space<smem>>
    %29 = vector.broadcast %28 : f32 to vector<8x128xf32>
    %30 = arith.mulf %6, %29 : vector<8x128xf32>
    %c0_11 = arith.constant 0 : index
    %c1_12 = arith.constant 1 : index
    %31 = memref.load %arg2[%c0_11, %c1_12] : memref<6x8xf32, #tpu.memory_space<smem>>
    %32 = vector.broadcast %31 : f32 to vector<8x128xf32>
    %33 = arith.mulf %9, %32 : vector<8x128xf32>
    %34 = arith.addf %30, %33 : vector<8x128xf32>
    %c0_13 = arith.constant 0 : index
    %c2_14 = arith.constant 2 : index
    %35 = memref.load %arg2[%c0_13, %c2_14] : memref<6x8xf32, #tpu.memory_space<smem>>
    %36 = vector.broadcast %35 : f32 to vector<8x128xf32>
    %37 = arith.mulf %12, %36 : vector<8x128xf32>
    %38 = arith.addf %34, %37 : vector<8x128xf32>
    %c0_15 = arith.constant 0 : index
    %c3_16 = arith.constant 3 : index
    %39 = memref.load %arg2[%c0_15, %c3_16] : memref<6x8xf32, #tpu.memory_space<smem>>
    %40 = vector.broadcast %39 : f32 to vector<8x128xf32>
    %41 = arith.mulf %15, %40 : vector<8x128xf32>
    %42 = arith.addf %38, %41 : vector<8x128xf32>
    %c0_17 = arith.constant 0 : index
    %c4_18 = arith.constant 4 : index
    %43 = memref.load %arg2[%c0_17, %c4_18] : memref<6x8xf32, #tpu.memory_space<smem>>
    %44 = vector.broadcast %43 : f32 to vector<8x128xf32>
    %45 = arith.mulf %18, %44 : vector<8x128xf32>
    %46 = arith.addf %42, %45 : vector<8x128xf32>
    %c0_19 = arith.constant 0 : index
    %c5_20 = arith.constant 5 : index
    %47 = memref.load %arg2[%c0_19, %c5_20] : memref<6x8xf32, #tpu.memory_space<smem>>
    %48 = vector.broadcast %47 : f32 to vector<8x128xf32>
    %49 = arith.mulf %21, %48 : vector<8x128xf32>
    %50 = arith.addf %46, %49 : vector<8x128xf32>
    %c0_21 = arith.constant 0 : index
    %c6_22 = arith.constant 6 : index
    %51 = memref.load %arg2[%c0_21, %c6_22] : memref<6x8xf32, #tpu.memory_space<smem>>
    %52 = vector.broadcast %51 : f32 to vector<8x128xf32>
    %53 = arith.mulf %24, %52 : vector<8x128xf32>
    %54 = arith.addf %50, %53 : vector<8x128xf32>
    %c0_23 = arith.constant 0 : index
    %c7_24 = arith.constant 7 : index
    %55 = memref.load %arg2[%c0_23, %c7_24] : memref<6x8xf32, #tpu.memory_space<smem>>
    %56 = vector.broadcast %55 : f32 to vector<8x128xf32>
    %57 = arith.mulf %27, %56 : vector<8x128xf32>
    %58 = arith.addf %54, %57 : vector<8x128xf32>
    %c0_25 = arith.constant 0 : index
    %59 = memref.load %arg3[%c0_25] : memref<6xf32, #tpu.memory_space<smem>>
    %60 = vector.broadcast %59 : f32 to vector<8x128xf32>
    %61 = arith.addf %58, %60 : vector<8x128xf32>
    %62 = math.exp %61 : vector<8x128xf32>
    %cst = arith.constant 1.000000e+00 : f32
    %63 = vector.broadcast %cst : f32 to vector<8x128xf32>
    %64 = arith.addf %63, %62 : vector<8x128xf32>
    %65 = tpu.reciprocal %64 {approx = true} : vector<8x128xf32> -> vector<8x128xf32>
    %c1_26 = arith.constant 1 : index
    %c0_27 = arith.constant 0 : index
    %66 = memref.load %arg2[%c1_26, %c0_27] : memref<6x8xf32, #tpu.memory_space<smem>>
    %67 = vector.broadcast %66 : f32 to vector<8x128xf32>
    %68 = arith.mulf %6, %67 : vector<8x128xf32>
    %c1_28 = arith.constant 1 : index
    %c1_29 = arith.constant 1 : index
    %69 = memref.load %arg2[%c1_28, %c1_29] : memref<6x8xf32, #tpu.memory_space<smem>>
    %70 = vector.broadcast %69 : f32 to vector<8x128xf32>
    %71 = arith.mulf %9, %70 : vector<8x128xf32>
    %72 = arith.addf %68, %71 : vector<8x128xf32>
    %c1_30 = arith.constant 1 : index
    %c2_31 = arith.constant 2 : index
    %73 = memref.load %arg2[%c1_30, %c2_31] : memref<6x8xf32, #tpu.memory_space<smem>>
    %74 = vector.broadcast %73 : f32 to vector<8x128xf32>
    %75 = arith.mulf %12, %74 : vector<8x128xf32>
    %76 = arith.addf %72, %75 : vector<8x128xf32>
    %c1_32 = arith.constant 1 : index
    %c3_33 = arith.constant 3 : index
    %77 = memref.load %arg2[%c1_32, %c3_33] : memref<6x8xf32, #tpu.memory_space<smem>>
    %78 = vector.broadcast %77 : f32 to vector<8x128xf32>
    %79 = arith.mulf %15, %78 : vector<8x128xf32>
    %80 = arith.addf %76, %79 : vector<8x128xf32>
    %c1_34 = arith.constant 1 : index
    %c4_35 = arith.constant 4 : index
    %81 = memref.load %arg2[%c1_34, %c4_35] : memref<6x8xf32, #tpu.memory_space<smem>>
    %82 = vector.broadcast %81 : f32 to vector<8x128xf32>
    %83 = arith.mulf %18, %82 : vector<8x128xf32>
    %84 = arith.addf %80, %83 : vector<8x128xf32>
    %c1_36 = arith.constant 1 : index
    %c5_37 = arith.constant 5 : index
    %85 = memref.load %arg2[%c1_36, %c5_37] : memref<6x8xf32, #tpu.memory_space<smem>>
    %86 = vector.broadcast %85 : f32 to vector<8x128xf32>
    %87 = arith.mulf %21, %86 : vector<8x128xf32>
    %88 = arith.addf %84, %87 : vector<8x128xf32>
    %c1_38 = arith.constant 1 : index
    %c6_39 = arith.constant 6 : index
    %89 = memref.load %arg2[%c1_38, %c6_39] : memref<6x8xf32, #tpu.memory_space<smem>>
    %90 = vector.broadcast %89 : f32 to vector<8x128xf32>
    %91 = arith.mulf %24, %90 : vector<8x128xf32>
    %92 = arith.addf %88, %91 : vector<8x128xf32>
    %c1_40 = arith.constant 1 : index
    %c7_41 = arith.constant 7 : index
    %93 = memref.load %arg2[%c1_40, %c7_41] : memref<6x8xf32, #tpu.memory_space<smem>>
    %94 = vector.broadcast %93 : f32 to vector<8x128xf32>
    %95 = arith.mulf %27, %94 : vector<8x128xf32>
    %96 = arith.addf %92, %95 : vector<8x128xf32>
    %c1_42 = arith.constant 1 : index
    %97 = memref.load %arg3[%c1_42] : memref<6xf32, #tpu.memory_space<smem>>
    %98 = vector.broadcast %97 : f32 to vector<8x128xf32>
    %99 = arith.addf %96, %98 : vector<8x128xf32>
    %100 = math.exp %99 : vector<8x128xf32>
    %cst_43 = arith.constant 1.000000e+00 : f32
    %101 = vector.broadcast %cst_43 : f32 to vector<8x128xf32>
    %102 = arith.addf %101, %100 : vector<8x128xf32>
    %103 = tpu.reciprocal %102 {approx = true} : vector<8x128xf32> -> vector<8x128xf32>
    %c2_44 = arith.constant 2 : index
    %c0_45 = arith.constant 0 : index
    %104 = memref.load %arg2[%c2_44, %c0_45] : memref<6x8xf32, #tpu.memory_space<smem>>
    %105 = vector.broadcast %104 : f32 to vector<8x128xf32>
    %106 = arith.mulf %6, %105 : vector<8x128xf32>
    %c2_46 = arith.constant 2 : index
    %c1_47 = arith.constant 1 : index
    %107 = memref.load %arg2[%c2_46, %c1_47] : memref<6x8xf32, #tpu.memory_space<smem>>
    %108 = vector.broadcast %107 : f32 to vector<8x128xf32>
    %109 = arith.mulf %9, %108 : vector<8x128xf32>
    %110 = arith.addf %106, %109 : vector<8x128xf32>
    %c2_48 = arith.constant 2 : index
    %c2_49 = arith.constant 2 : index
    %111 = memref.load %arg2[%c2_48, %c2_49] : memref<6x8xf32, #tpu.memory_space<smem>>
    %112 = vector.broadcast %111 : f32 to vector<8x128xf32>
    %113 = arith.mulf %12, %112 : vector<8x128xf32>
    %114 = arith.addf %110, %113 : vector<8x128xf32>
    %c2_50 = arith.constant 2 : index
    %c3_51 = arith.constant 3 : index
    %115 = memref.load %arg2[%c2_50, %c3_51] : memref<6x8xf32, #tpu.memory_space<smem>>
    %116 = vector.broadcast %115 : f32 to vector<8x128xf32>
    %117 = arith.mulf %15, %116 : vector<8x128xf32>
    %118 = arith.addf %114, %117 : vector<8x128xf32>
    %c2_52 = arith.constant 2 : index
    %c4_53 = arith.constant 4 : index
    %119 = memref.load %arg2[%c2_52, %c4_53] : memref<6x8xf32, #tpu.memory_space<smem>>
    %120 = vector.broadcast %119 : f32 to vector<8x128xf32>
    %121 = arith.mulf %18, %120 : vector<8x128xf32>
    %122 = arith.addf %118, %121 : vector<8x128xf32>
    %c2_54 = arith.constant 2 : index
    %c5_55 = arith.constant 5 : index
    %123 = memref.load %arg2[%c2_54, %c5_55] : memref<6x8xf32, #tpu.memory_space<smem>>
    %124 = vector.broadcast %123 : f32 to vector<8x128xf32>
    %125 = arith.mulf %21, %124 : vector<8x128xf32>
    %126 = arith.addf %122, %125 : vector<8x128xf32>
    %c2_56 = arith.constant 2 : index
    %c6_57 = arith.constant 6 : index
    %127 = memref.load %arg2[%c2_56, %c6_57] : memref<6x8xf32, #tpu.memory_space<smem>>
    %128 = vector.broadcast %127 : f32 to vector<8x128xf32>
    %129 = arith.mulf %24, %128 : vector<8x128xf32>
    %130 = arith.addf %126, %129 : vector<8x128xf32>
    %c2_58 = arith.constant 2 : index
    %c7_59 = arith.constant 7 : index
    %131 = memref.load %arg2[%c2_58, %c7_59] : memref<6x8xf32, #tpu.memory_space<smem>>
    %132 = vector.broadcast %131 : f32 to vector<8x128xf32>
    %133 = arith.mulf %27, %132 : vector<8x128xf32>
    %134 = arith.addf %130, %133 : vector<8x128xf32>
    %c2_60 = arith.constant 2 : index
    %135 = memref.load %arg3[%c2_60] : memref<6xf32, #tpu.memory_space<smem>>
    %136 = vector.broadcast %135 : f32 to vector<8x128xf32>
    %137 = arith.addf %134, %136 : vector<8x128xf32>
    %138 = math.exp %137 : vector<8x128xf32>
    %cst_61 = arith.constant 1.000000e+00 : f32
    %139 = vector.broadcast %cst_61 : f32 to vector<8x128xf32>
    %140 = arith.addf %139, %138 : vector<8x128xf32>
    %141 = tpu.reciprocal %140 {approx = true} : vector<8x128xf32> -> vector<8x128xf32>
    %c3_62 = arith.constant 3 : index
    %c0_63 = arith.constant 0 : index
    %142 = memref.load %arg2[%c3_62, %c0_63] : memref<6x8xf32, #tpu.memory_space<smem>>
    %143 = vector.broadcast %142 : f32 to vector<8x128xf32>
    %144 = arith.mulf %6, %143 : vector<8x128xf32>
    %c3_64 = arith.constant 3 : index
    %c1_65 = arith.constant 1 : index
    %145 = memref.load %arg2[%c3_64, %c1_65] : memref<6x8xf32, #tpu.memory_space<smem>>
    %146 = vector.broadcast %145 : f32 to vector<8x128xf32>
    %147 = arith.mulf %9, %146 : vector<8x128xf32>
    %148 = arith.addf %144, %147 : vector<8x128xf32>
    %c3_66 = arith.constant 3 : index
    %c2_67 = arith.constant 2 : index
    %149 = memref.load %arg2[%c3_66, %c2_67] : memref<6x8xf32, #tpu.memory_space<smem>>
    %150 = vector.broadcast %149 : f32 to vector<8x128xf32>
    %151 = arith.mulf %12, %150 : vector<8x128xf32>
    %152 = arith.addf %148, %151 : vector<8x128xf32>
    %c3_68 = arith.constant 3 : index
    %c3_69 = arith.constant 3 : index
    %153 = memref.load %arg2[%c3_68, %c3_69] : memref<6x8xf32, #tpu.memory_space<smem>>
    %154 = vector.broadcast %153 : f32 to vector<8x128xf32>
    %155 = arith.mulf %15, %154 : vector<8x128xf32>
    %156 = arith.addf %152, %155 : vector<8x128xf32>
    %c3_70 = arith.constant 3 : index
    %c4_71 = arith.constant 4 : index
    %157 = memref.load %arg2[%c3_70, %c4_71] : memref<6x8xf32, #tpu.memory_space<smem>>
    %158 = vector.broadcast %157 : f32 to vector<8x128xf32>
    %159 = arith.mulf %18, %158 : vector<8x128xf32>
    %160 = arith.addf %156, %159 : vector<8x128xf32>
    %c3_72 = arith.constant 3 : index
    %c5_73 = arith.constant 5 : index
    %161 = memref.load %arg2[%c3_72, %c5_73] : memref<6x8xf32, #tpu.memory_space<smem>>
    %162 = vector.broadcast %161 : f32 to vector<8x128xf32>
    %163 = arith.mulf %21, %162 : vector<8x128xf32>
    %164 = arith.addf %160, %163 : vector<8x128xf32>
    %c3_74 = arith.constant 3 : index
    %c6_75 = arith.constant 6 : index
    %165 = memref.load %arg2[%c3_74, %c6_75] : memref<6x8xf32, #tpu.memory_space<smem>>
    %166 = vector.broadcast %165 : f32 to vector<8x128xf32>
    %167 = arith.mulf %24, %166 : vector<8x128xf32>
    %168 = arith.addf %164, %167 : vector<8x128xf32>
    %c3_76 = arith.constant 3 : index
    %c7_77 = arith.constant 7 : index
    %169 = memref.load %arg2[%c3_76, %c7_77] : memref<6x8xf32, #tpu.memory_space<smem>>
    %170 = vector.broadcast %169 : f32 to vector<8x128xf32>
    %171 = arith.mulf %27, %170 : vector<8x128xf32>
    %172 = arith.addf %168, %171 : vector<8x128xf32>
    %c3_78 = arith.constant 3 : index
    %173 = memref.load %arg3[%c3_78] : memref<6xf32, #tpu.memory_space<smem>>
    %174 = vector.broadcast %173 : f32 to vector<8x128xf32>
    %175 = arith.addf %172, %174 : vector<8x128xf32>
    %176 = math.exp %175 : vector<8x128xf32>
    %cst_79 = arith.constant 1.000000e+00 : f32
    %177 = vector.broadcast %cst_79 : f32 to vector<8x128xf32>
    %178 = arith.addf %177, %176 : vector<8x128xf32>
    %179 = tpu.reciprocal %178 {approx = true} : vector<8x128xf32> -> vector<8x128xf32>
    %c4_80 = arith.constant 4 : index
    %c0_81 = arith.constant 0 : index
    %180 = memref.load %arg2[%c4_80, %c0_81] : memref<6x8xf32, #tpu.memory_space<smem>>
    %181 = vector.broadcast %180 : f32 to vector<8x128xf32>
    %182 = arith.mulf %6, %181 : vector<8x128xf32>
    %c4_82 = arith.constant 4 : index
    %c1_83 = arith.constant 1 : index
    %183 = memref.load %arg2[%c4_82, %c1_83] : memref<6x8xf32, #tpu.memory_space<smem>>
    %184 = vector.broadcast %183 : f32 to vector<8x128xf32>
    %185 = arith.mulf %9, %184 : vector<8x128xf32>
    %186 = arith.addf %182, %185 : vector<8x128xf32>
    %c4_84 = arith.constant 4 : index
    %c2_85 = arith.constant 2 : index
    %187 = memref.load %arg2[%c4_84, %c2_85] : memref<6x8xf32, #tpu.memory_space<smem>>
    %188 = vector.broadcast %187 : f32 to vector<8x128xf32>
    %189 = arith.mulf %12, %188 : vector<8x128xf32>
    %190 = arith.addf %186, %189 : vector<8x128xf32>
    %c4_86 = arith.constant 4 : index
    %c3_87 = arith.constant 3 : index
    %191 = memref.load %arg2[%c4_86, %c3_87] : memref<6x8xf32, #tpu.memory_space<smem>>
    %192 = vector.broadcast %191 : f32 to vector<8x128xf32>
    %193 = arith.mulf %15, %192 : vector<8x128xf32>
    %194 = arith.addf %190, %193 : vector<8x128xf32>
    %c4_88 = arith.constant 4 : index
    %c4_89 = arith.constant 4 : index
    %195 = memref.load %arg2[%c4_88, %c4_89] : memref<6x8xf32, #tpu.memory_space<smem>>
    %196 = vector.broadcast %195 : f32 to vector<8x128xf32>
    %197 = arith.mulf %18, %196 : vector<8x128xf32>
    %198 = arith.addf %194, %197 : vector<8x128xf32>
    %c4_90 = arith.constant 4 : index
    %c5_91 = arith.constant 5 : index
    %199 = memref.load %arg2[%c4_90, %c5_91] : memref<6x8xf32, #tpu.memory_space<smem>>
    %200 = vector.broadcast %199 : f32 to vector<8x128xf32>
    %201 = arith.mulf %21, %200 : vector<8x128xf32>
    %202 = arith.addf %198, %201 : vector<8x128xf32>
    %c4_92 = arith.constant 4 : index
    %c6_93 = arith.constant 6 : index
    %203 = memref.load %arg2[%c4_92, %c6_93] : memref<6x8xf32, #tpu.memory_space<smem>>
    %204 = vector.broadcast %203 : f32 to vector<8x128xf32>
    %205 = arith.mulf %24, %204 : vector<8x128xf32>
    %206 = arith.addf %202, %205 : vector<8x128xf32>
    %c4_94 = arith.constant 4 : index
    %c7_95 = arith.constant 7 : index
    %207 = memref.load %arg2[%c4_94, %c7_95] : memref<6x8xf32, #tpu.memory_space<smem>>
    %208 = vector.broadcast %207 : f32 to vector<8x128xf32>
    %209 = arith.mulf %27, %208 : vector<8x128xf32>
    %210 = arith.addf %206, %209 : vector<8x128xf32>
    %c4_96 = arith.constant 4 : index
    %211 = memref.load %arg3[%c4_96] : memref<6xf32, #tpu.memory_space<smem>>
    %212 = vector.broadcast %211 : f32 to vector<8x128xf32>
    %213 = arith.addf %210, %212 : vector<8x128xf32>
    %214 = math.exp %213 : vector<8x128xf32>
    %cst_97 = arith.constant 1.000000e+00 : f32
    %215 = vector.broadcast %cst_97 : f32 to vector<8x128xf32>
    %216 = arith.addf %215, %214 : vector<8x128xf32>
    %217 = tpu.reciprocal %216 {approx = true} : vector<8x128xf32> -> vector<8x128xf32>
    %c5_98 = arith.constant 5 : index
    %c0_99 = arith.constant 0 : index
    %218 = memref.load %arg2[%c5_98, %c0_99] : memref<6x8xf32, #tpu.memory_space<smem>>
    %219 = vector.broadcast %218 : f32 to vector<8x128xf32>
    %220 = arith.mulf %6, %219 : vector<8x128xf32>
    %c5_100 = arith.constant 5 : index
    %c1_101 = arith.constant 1 : index
    %221 = memref.load %arg2[%c5_100, %c1_101] : memref<6x8xf32, #tpu.memory_space<smem>>
    %222 = vector.broadcast %221 : f32 to vector<8x128xf32>
    %223 = arith.mulf %9, %222 : vector<8x128xf32>
    %224 = arith.addf %220, %223 : vector<8x128xf32>
    %c5_102 = arith.constant 5 : index
    %c2_103 = arith.constant 2 : index
    %225 = memref.load %arg2[%c5_102, %c2_103] : memref<6x8xf32, #tpu.memory_space<smem>>
    %226 = vector.broadcast %225 : f32 to vector<8x128xf32>
    %227 = arith.mulf %12, %226 : vector<8x128xf32>
    %228 = arith.addf %224, %227 : vector<8x128xf32>
    %c5_104 = arith.constant 5 : index
    %c3_105 = arith.constant 3 : index
    %229 = memref.load %arg2[%c5_104, %c3_105] : memref<6x8xf32, #tpu.memory_space<smem>>
    %230 = vector.broadcast %229 : f32 to vector<8x128xf32>
    %231 = arith.mulf %15, %230 : vector<8x128xf32>
    %232 = arith.addf %228, %231 : vector<8x128xf32>
    %c5_106 = arith.constant 5 : index
    %c4_107 = arith.constant 4 : index
    %233 = memref.load %arg2[%c5_106, %c4_107] : memref<6x8xf32, #tpu.memory_space<smem>>
    %234 = vector.broadcast %233 : f32 to vector<8x128xf32>
    %235 = arith.mulf %18, %234 : vector<8x128xf32>
    %236 = arith.addf %232, %235 : vector<8x128xf32>
    %c5_108 = arith.constant 5 : index
    %c5_109 = arith.constant 5 : index
    %237 = memref.load %arg2[%c5_108, %c5_109] : memref<6x8xf32, #tpu.memory_space<smem>>
    %238 = vector.broadcast %237 : f32 to vector<8x128xf32>
    %239 = arith.mulf %21, %238 : vector<8x128xf32>
    %240 = arith.addf %236, %239 : vector<8x128xf32>
    %c5_110 = arith.constant 5 : index
    %c6_111 = arith.constant 6 : index
    %241 = memref.load %arg2[%c5_110, %c6_111] : memref<6x8xf32, #tpu.memory_space<smem>>
    %242 = vector.broadcast %241 : f32 to vector<8x128xf32>
    %243 = arith.mulf %24, %242 : vector<8x128xf32>
    %244 = arith.addf %240, %243 : vector<8x128xf32>
    %c5_112 = arith.constant 5 : index
    %c7_113 = arith.constant 7 : index
    %245 = memref.load %arg2[%c5_112, %c7_113] : memref<6x8xf32, #tpu.memory_space<smem>>
    %246 = vector.broadcast %245 : f32 to vector<8x128xf32>
    %247 = arith.mulf %27, %246 : vector<8x128xf32>
    %248 = arith.addf %244, %247 : vector<8x128xf32>
    %c5_114 = arith.constant 5 : index
    %249 = memref.load %arg3[%c5_114] : memref<6xf32, #tpu.memory_space<smem>>
    %250 = vector.broadcast %249 : f32 to vector<8x128xf32>
    %251 = arith.addf %248, %250 : vector<8x128xf32>
    %252 = math.exp %251 : vector<8x128xf32>
    %cst_115 = arith.constant 1.000000e+00 : f32
    %253 = vector.broadcast %cst_115 : f32 to vector<8x128xf32>
    %254 = arith.addf %253, %252 : vector<8x128xf32>
    %255 = tpu.reciprocal %254 {approx = true} : vector<8x128xf32> -> vector<8x128xf32>
    %c0_116 = arith.constant 0 : index
    %c0_117 = arith.constant 0 : index
    %256 = memref.load %arg4[%c0_116, %c0_117] : memref<4x6xf32, #tpu.memory_space<smem>>
    %257 = vector.broadcast %256 : f32 to vector<8x128xf32>
    %258 = arith.mulf %65, %257 : vector<8x128xf32>
    %c0_118 = arith.constant 0 : index
    %c1_119 = arith.constant 1 : index
    %259 = memref.load %arg4[%c0_118, %c1_119] : memref<4x6xf32, #tpu.memory_space<smem>>
    %260 = vector.broadcast %259 : f32 to vector<8x128xf32>
    %261 = arith.mulf %103, %260 : vector<8x128xf32>
    %262 = arith.addf %258, %261 : vector<8x128xf32>
    %c0_120 = arith.constant 0 : index
    %c2_121 = arith.constant 2 : index
    %263 = memref.load %arg4[%c0_120, %c2_121] : memref<4x6xf32, #tpu.memory_space<smem>>
    %264 = vector.broadcast %263 : f32 to vector<8x128xf32>
    %265 = arith.mulf %141, %264 : vector<8x128xf32>
    %266 = arith.addf %262, %265 : vector<8x128xf32>
    %c0_122 = arith.constant 0 : index
    %c3_123 = arith.constant 3 : index
    %267 = memref.load %arg4[%c0_122, %c3_123] : memref<4x6xf32, #tpu.memory_space<smem>>
    %268 = vector.broadcast %267 : f32 to vector<8x128xf32>
    %269 = arith.mulf %179, %268 : vector<8x128xf32>
    %270 = arith.addf %266, %269 : vector<8x128xf32>
    %c0_124 = arith.constant 0 : index
    %c4_125 = arith.constant 4 : index
    %271 = memref.load %arg4[%c0_124, %c4_125] : memref<4x6xf32, #tpu.memory_space<smem>>
    %272 = vector.broadcast %271 : f32 to vector<8x128xf32>
    %273 = arith.mulf %217, %272 : vector<8x128xf32>
    %274 = arith.addf %270, %273 : vector<8x128xf32>
    %c0_126 = arith.constant 0 : index
    %c5_127 = arith.constant 5 : index
    %275 = memref.load %arg4[%c0_126, %c5_127] : memref<4x6xf32, #tpu.memory_space<smem>>
    %276 = vector.broadcast %275 : f32 to vector<8x128xf32>
    %277 = arith.mulf %255, %276 : vector<8x128xf32>
    %278 = arith.addf %274, %277 : vector<8x128xf32>
    %c0_128 = arith.constant 0 : index
    %279 = memref.load %arg5[%c0_128] : memref<4xf32, #tpu.memory_space<smem>>
    %280 = vector.broadcast %279 : f32 to vector<8x128xf32>
    %281 = arith.addf %278, %280 : vector<8x128xf32>
    %282 = math.exp %281 : vector<8x128xf32>
    %cst_129 = arith.constant 1.000000e+00 : f32
    %283 = vector.broadcast %cst_129 : f32 to vector<8x128xf32>
    %284 = arith.addf %283, %282 : vector<8x128xf32>
    %285 = tpu.reciprocal %284 {approx = true} : vector<8x128xf32> -> vector<8x128xf32>
    %c1_130 = arith.constant 1 : index
    %c0_131 = arith.constant 0 : index
    %286 = memref.load %arg4[%c1_130, %c0_131] : memref<4x6xf32, #tpu.memory_space<smem>>
    %287 = vector.broadcast %286 : f32 to vector<8x128xf32>
    %288 = arith.mulf %65, %287 : vector<8x128xf32>
    %c1_132 = arith.constant 1 : index
    %c1_133 = arith.constant 1 : index
    %289 = memref.load %arg4[%c1_132, %c1_133] : memref<4x6xf32, #tpu.memory_space<smem>>
    %290 = vector.broadcast %289 : f32 to vector<8x128xf32>
    %291 = arith.mulf %103, %290 : vector<8x128xf32>
    %292 = arith.addf %288, %291 : vector<8x128xf32>
    %c1_134 = arith.constant 1 : index
    %c2_135 = arith.constant 2 : index
    %293 = memref.load %arg4[%c1_134, %c2_135] : memref<4x6xf32, #tpu.memory_space<smem>>
    %294 = vector.broadcast %293 : f32 to vector<8x128xf32>
    %295 = arith.mulf %141, %294 : vector<8x128xf32>
    %296 = arith.addf %292, %295 : vector<8x128xf32>
    %c1_136 = arith.constant 1 : index
    %c3_137 = arith.constant 3 : index
    %297 = memref.load %arg4[%c1_136, %c3_137] : memref<4x6xf32, #tpu.memory_space<smem>>
    %298 = vector.broadcast %297 : f32 to vector<8x128xf32>
    %299 = arith.mulf %179, %298 : vector<8x128xf32>
    %300 = arith.addf %296, %299 : vector<8x128xf32>
    %c1_138 = arith.constant 1 : index
    %c4_139 = arith.constant 4 : index
    %301 = memref.load %arg4[%c1_138, %c4_139] : memref<4x6xf32, #tpu.memory_space<smem>>
    %302 = vector.broadcast %301 : f32 to vector<8x128xf32>
    %303 = arith.mulf %217, %302 : vector<8x128xf32>
    %304 = arith.addf %300, %303 : vector<8x128xf32>
    %c1_140 = arith.constant 1 : index
    %c5_141 = arith.constant 5 : index
    %305 = memref.load %arg4[%c1_140, %c5_141] : memref<4x6xf32, #tpu.memory_space<smem>>
    %306 = vector.broadcast %305 : f32 to vector<8x128xf32>
    %307 = arith.mulf %255, %306 : vector<8x128xf32>
    %308 = arith.addf %304, %307 : vector<8x128xf32>
    %c1_142 = arith.constant 1 : index
    %309 = memref.load %arg5[%c1_142] : memref<4xf32, #tpu.memory_space<smem>>
    %310 = vector.broadcast %309 : f32 to vector<8x128xf32>
    %311 = arith.addf %308, %310 : vector<8x128xf32>
    %312 = math.exp %311 : vector<8x128xf32>
    %cst_143 = arith.constant 1.000000e+00 : f32
    %313 = vector.broadcast %cst_143 : f32 to vector<8x128xf32>
    %314 = arith.addf %313, %312 : vector<8x128xf32>
    %315 = tpu.reciprocal %314 {approx = true} : vector<8x128xf32> -> vector<8x128xf32>
    %c2_144 = arith.constant 2 : index
    %c0_145 = arith.constant 0 : index
    %316 = memref.load %arg4[%c2_144, %c0_145] : memref<4x6xf32, #tpu.memory_space<smem>>
    %317 = vector.broadcast %316 : f32 to vector<8x128xf32>
    %318 = arith.mulf %65, %317 : vector<8x128xf32>
    %c2_146 = arith.constant 2 : index
    %c1_147 = arith.constant 1 : index
    %319 = memref.load %arg4[%c2_146, %c1_147] : memref<4x6xf32, #tpu.memory_space<smem>>
    %320 = vector.broadcast %319 : f32 to vector<8x128xf32>
    %321 = arith.mulf %103, %320 : vector<8x128xf32>
    %322 = arith.addf %318, %321 : vector<8x128xf32>
    %c2_148 = arith.constant 2 : index
    %c2_149 = arith.constant 2 : index
    %323 = memref.load %arg4[%c2_148, %c2_149] : memref<4x6xf32, #tpu.memory_space<smem>>
    %324 = vector.broadcast %323 : f32 to vector<8x128xf32>
    %325 = arith.mulf %141, %324 : vector<8x128xf32>
    %326 = arith.addf %322, %325 : vector<8x128xf32>
    %c2_150 = arith.constant 2 : index
    %c3_151 = arith.constant 3 : index
    %327 = memref.load %arg4[%c2_150, %c3_151] : memref<4x6xf32, #tpu.memory_space<smem>>
    %328 = vector.broadcast %327 : f32 to vector<8x128xf32>
    %329 = arith.mulf %179, %328 : vector<8x128xf32>
    %330 = arith.addf %326, %329 : vector<8x128xf32>
    %c2_152 = arith.constant 2 : index
    %c4_153 = arith.constant 4 : index
    %331 = memref.load %arg4[%c2_152, %c4_153] : memref<4x6xf32, #tpu.memory_space<smem>>
    %332 = vector.broadcast %331 : f32 to vector<8x128xf32>
    %333 = arith.mulf %217, %332 : vector<8x128xf32>
    %334 = arith.addf %330, %333 : vector<8x128xf32>
    %c2_154 = arith.constant 2 : index
    %c5_155 = arith.constant 5 : index
    %335 = memref.load %arg4[%c2_154, %c5_155] : memref<4x6xf32, #tpu.memory_space<smem>>
    %336 = vector.broadcast %335 : f32 to vector<8x128xf32>
    %337 = arith.mulf %255, %336 : vector<8x128xf32>
    %338 = arith.addf %334, %337 : vector<8x128xf32>
    %c2_156 = arith.constant 2 : index
    %339 = memref.load %arg5[%c2_156] : memref<4xf32, #tpu.memory_space<smem>>
    %340 = vector.broadcast %339 : f32 to vector<8x128xf32>
    %341 = arith.addf %338, %340 : vector<8x128xf32>
    %342 = math.exp %341 : vector<8x128xf32>
    %cst_157 = arith.constant 1.000000e+00 : f32
    %343 = vector.broadcast %cst_157 : f32 to vector<8x128xf32>
    %344 = arith.addf %343, %342 : vector<8x128xf32>
    %345 = tpu.reciprocal %344 {approx = true} : vector<8x128xf32> -> vector<8x128xf32>
    %c3_158 = arith.constant 3 : index
    %c0_159 = arith.constant 0 : index
    %346 = memref.load %arg4[%c3_158, %c0_159] : memref<4x6xf32, #tpu.memory_space<smem>>
    %347 = vector.broadcast %346 : f32 to vector<8x128xf32>
    %348 = arith.mulf %65, %347 : vector<8x128xf32>
    %c3_160 = arith.constant 3 : index
    %c1_161 = arith.constant 1 : index
    %349 = memref.load %arg4[%c3_160, %c1_161] : memref<4x6xf32, #tpu.memory_space<smem>>
    %350 = vector.broadcast %349 : f32 to vector<8x128xf32>
    %351 = arith.mulf %103, %350 : vector<8x128xf32>
    %352 = arith.addf %348, %351 : vector<8x128xf32>
    %c3_162 = arith.constant 3 : index
    %c2_163 = arith.constant 2 : index
    %353 = memref.load %arg4[%c3_162, %c2_163] : memref<4x6xf32, #tpu.memory_space<smem>>
    %354 = vector.broadcast %353 : f32 to vector<8x128xf32>
    %355 = arith.mulf %141, %354 : vector<8x128xf32>
    %356 = arith.addf %352, %355 : vector<8x128xf32>
    %c3_164 = arith.constant 3 : index
    %c3_165 = arith.constant 3 : index
    %357 = memref.load %arg4[%c3_164, %c3_165] : memref<4x6xf32, #tpu.memory_space<smem>>
    %358 = vector.broadcast %357 : f32 to vector<8x128xf32>
    %359 = arith.mulf %179, %358 : vector<8x128xf32>
    %360 = arith.addf %356, %359 : vector<8x128xf32>
    %c3_166 = arith.constant 3 : index
    %c4_167 = arith.constant 4 : index
    %361 = memref.load %arg4[%c3_166, %c4_167] : memref<4x6xf32, #tpu.memory_space<smem>>
    %362 = vector.broadcast %361 : f32 to vector<8x128xf32>
    %363 = arith.mulf %217, %362 : vector<8x128xf32>
    %364 = arith.addf %360, %363 : vector<8x128xf32>
    %c3_168 = arith.constant 3 : index
    %c5_169 = arith.constant 5 : index
    %365 = memref.load %arg4[%c3_168, %c5_169] : memref<4x6xf32, #tpu.memory_space<smem>>
    %366 = vector.broadcast %365 : f32 to vector<8x128xf32>
    %367 = arith.mulf %255, %366 : vector<8x128xf32>
    %368 = arith.addf %364, %367 : vector<8x128xf32>
    %c3_170 = arith.constant 3 : index
    %369 = memref.load %arg5[%c3_170] : memref<4xf32, #tpu.memory_space<smem>>
    %370 = vector.broadcast %369 : f32 to vector<8x128xf32>
    %371 = arith.addf %368, %370 : vector<8x128xf32>
    %372 = math.exp %371 : vector<8x128xf32>
    %cst_171 = arith.constant 1.000000e+00 : f32
    %373 = vector.broadcast %cst_171 : f32 to vector<8x128xf32>
    %374 = arith.addf %373, %372 : vector<8x128xf32>
    %375 = tpu.reciprocal %374 {approx = true} : vector<8x128xf32> -> vector<8x128xf32>
    %c0_172 = arith.constant 0 : index
    %c0_173 = arith.constant 0 : index
    %376 = memref.load %arg6[%c0_172, %c0_173] : memref<1x4xf32, #tpu.memory_space<smem>>
    %377 = vector.broadcast %376 : f32 to vector<8x128xf32>
    %378 = arith.mulf %285, %377 : vector<8x128xf32>
    %c0_174 = arith.constant 0 : index
    %c1_175 = arith.constant 1 : index
    %379 = memref.load %arg6[%c0_174, %c1_175] : memref<1x4xf32, #tpu.memory_space<smem>>
    %380 = vector.broadcast %379 : f32 to vector<8x128xf32>
    %381 = arith.mulf %315, %380 : vector<8x128xf32>
    %382 = arith.addf %378, %381 : vector<8x128xf32>
    %c0_176 = arith.constant 0 : index
    %c2_177 = arith.constant 2 : index
    %383 = memref.load %arg6[%c0_176, %c2_177] : memref<1x4xf32, #tpu.memory_space<smem>>
    %384 = vector.broadcast %383 : f32 to vector<8x128xf32>
    %385 = arith.mulf %345, %384 : vector<8x128xf32>
    %386 = arith.addf %382, %385 : vector<8x128xf32>
    %c0_178 = arith.constant 0 : index
    %c3_179 = arith.constant 3 : index
    %387 = memref.load %arg6[%c0_178, %c3_179] : memref<1x4xf32, #tpu.memory_space<smem>>
    %388 = vector.broadcast %387 : f32 to vector<8x128xf32>
    %389 = arith.mulf %375, %388 : vector<8x128xf32>
    %390 = arith.addf %386, %389 : vector<8x128xf32>
    %c0_180 = arith.constant 0 : index
    %391 = memref.load %arg7[%c0_180] : memref<1xf32, #tpu.memory_space<smem>>
    %392 = vector.broadcast %391 : f32 to vector<8x128xf32>
    %393 = arith.addf %390, %392 : vector<8x128xf32>
    %394 = math.exp %393 : vector<8x128xf32>
    %cst_181 = arith.constant 1.000000e+00 : f32
    %395 = vector.broadcast %cst_181 : f32 to vector<8x128xf32>
    %396 = arith.addf %395, %394 : vector<8x128xf32>
    %397 = tpu.reciprocal %396 {approx = true} : vector<8x128xf32> -> vector<8x128xf32>
    %398 = arith.index_cast %3 : i32 to index
    %c0_182 = arith.constant 0 : index
    %399 = vector.load %arg8[%398, %c0_182] : memref<8x128xf32, #tpu.memory_space<vmem>>, vector<8x128xf32>
    tpu.vector_store %arg8[%398, %c0_182], %397 {strides = array<i32>} : memref<8x128xf32, #tpu.memory_space<vmem>>, vector<8x128xf32>,
    %c1_i32_183 = arith.constant 1 : i32
    return
  }
  func.func @transform_0(%arg0: i32) -> (i32, i32, i32) {
    %c0_i32 = arith.constant 0 : i32
    %c0_i32_0 = arith.constant 0 : i32
    %c0_i32_1 = arith.constant 0 : i32
    return %c0_i32, %arg0, %c0_i32_0 : i32, i32, i32
  }
  func.func @transform_1(%arg0: i32) -> (i32, i32) {
    %c0_i32 = arith.constant 0 : i32
    %c0_i32_0 = arith.constant 0 : i32
    %c0_i32_1 = arith.constant 0 : i32
    return %c0_i32, %c0_i32_0 : i32, i32
  }
  func.func @transform_2(%arg0: i32) -> i32 {
    %c0_i32 = arith.constant 0 : i32
    %c0_i32_0 = arith.constant 0 : i32
    return %c0_i32 : i32
  }
  func.func @transform_3(%arg0: i32) -> (i32, i32) {
    %c0_i32 = arith.constant 0 : i32
    %c0_i32_0 = arith.constant 0 : i32
    %c0_i32_1 = arith.constant 0 : i32
    return %c0_i32, %c0_i32_0 : i32, i32
  }
  func.func @transform_4(%arg0: i32) -> i32 {
    %c0_i32 = arith.constant 0 : i32
    %c0_i32_0 = arith.constant 0 : i32
    return %c0_i32 : i32
  }
  func.func @transform_5(%arg0: i32) -> (i32, i32) {
    %c0_i32 = arith.constant 0 : i32
    %c0_i32_0 = arith.constant 0 : i32
    %c0_i32_1 = arith.constant 0 : i32
    return %c0_i32, %c0_i32_0 : i32, i32
  }
  func.func @transform_6(%arg0: i32) -> i32 {
    %c0_i32 = arith.constant 0 : i32
    %c0_i32_0 = arith.constant 0 : i32
    return %c0_i32 : i32
  }
  func.func @transform_7(%arg0: i32) -> (i32, i32) {
    %c0_i32 = arith.constant 0 : i32
    %c0_i32_0 = arith.constant 0 : i32
    return %arg0, %c0_i32 : i32, i32
  }
}

</mosaic_0001>

<llo_original>
// kernel: tpu_custom_call.1
$region0: #{tpu_custom_call.1}
  #allocation0 [shape = 'u32[]', space=smem, size = 0x4, offset = 0x4, fixed_abs, tag = 'smem constant byte address 0x4 - core index']
  #allocation1 [shape = 'u32[144,128]{1,0:T(1,128)}', space=vmem, size = 0x12000, scoped, tag = 'internal scratch']
  #allocation2 [shape = 'f32[1]{0:T(128)S(6)}', space=smem, size = 0x200, scoped, tag = 'scoped memory for tpu_custom_call.1']
  %s0 = inlined_call_operand.hbm [shape: f32[8,8,128], index: 0, kind: input, shape index: {}]
  %s1 = inlined_call_operand.hbm [shape: f32[6,8], index: 1, kind: input, shape index: {}]
  %s2 = inlined_call_operand.vmem [shape: f32[6], index: 2, kind: input, shape index: {}]
  %s3 = inlined_call_operand.vmem [shape: f32[4,6], index: 3, kind: input, shape index: {}]
  %s4 = inlined_call_operand.vmem [shape: f32[4], index: 4, kind: input, shape index: {}]
  %s5 = inlined_call_operand.vmem [shape: f32[1,4], index: 5, kind: input, shape index: {}]
  %s6 = inlined_call_operand.<no memory space> [shape: f32[1], index: 6, kind: input, shape index: {}]
  %s7 = inlined_call_operand.hbm [shape: f32[8,128], index: 7, kind: output, shape index: {}]
  %s8 = sld [smem:[#allocation0]]
  $region62: #{tpu_custom_call.1} parent=0
    _
  %s10 = ssub.s32 1, %s8
  %s11 = scalar_select 0, %s10, %s8
  %12 = sst [smem:[#allocation2]] %s6
  $region1: #{tpu_custom_call.1} parent=0
    #allocation3 [shape = 'u8[32768]{0}', space=vmem, size = 0x8000, scoped, tag = 'input window, operand 0, single buffered']
    #allocation4 [shape = 's32[1]{0}', space=sflag, size = 0x4, scoped, tag = 'scoped memory for tpu_custom_call.1']
    #allocation5 [shape = 's32[1]{0}', space=sflag, size = 0x4, scoped, tag = 'scoped memory for tpu_custom_call.1']
    #allocation6 [shape = 's32[1]{0}', space=sflag, size = 0x4, scoped, tag = 'scoped memory for tpu_custom_call.1']
    #allocation7 [shape = 's32[1]{0}', space=sflag, size = 0x4, scoped, tag = 'scoped memory for tpu_custom_call.1']
    #allocation8 [shape = 'u8[4096]{0}', space=smem, size = 0x1000, scoped, tag = 'input window, operand 1, single buffered']
    #allocation9 [shape = 'u8[512]{0}', space=smem, size = 0x200, scoped, tag = 'input window, operand 2, single buffered']
    #allocation10 [shape = 'u8[2048]{0}', space=smem, size = 0x800, scoped, tag = 'input window, operand 3, single buffered']
    #allocation11 [shape = 's32[1]{0}', space=sflag, size = 0x4, scoped, tag = 'scoped memory for tpu_custom_call.1']
    #allocation12 [shape = 'u8[512]{0}', space=smem, size = 0x200, scoped, tag = 'input window, operand 4, single buffered']
    #allocation13 [shape = 'u8[512]{0}', space=smem, size = 0x200, scoped, tag = 'input window, operand 5, single buffered']
    #allocation14 [shape = 's32[1]{0}', space=sflag, size = 0x4, scoped, tag = 'scoped memory for tpu_custom_call.1']
    #allocation15 [shape = 'u8[4096]{0}', space=vmem, size = 0x1000, scoped, tag = 'output window, operand 0, single buffered']
    %13 = vsyncpa [#allocation4], 0
    %14 = vsyncpa [#allocation6], 0
    %15 = vsyncpa [#allocation7], 0
    %16 = vsyncpa [#allocation11], 0
    %17 = vsyncpa [#allocation14], 0
    %18 = vsyncpa [#allocation5], 0
    // Predicated region
    $region2: #{tpu_custom_call.1} parent=1 // pred_check
      _
    $region3: #{tpu_custom_call.1} parent=1 // pred_check_branch
      %20 = sbr.rel (0) target = $region5
    $region4: #{tpu_custom_call.1} parent=1 // pred_region
      %s22 = ssub.s32 1024, 1024
      %23 = vsyncadd [#allocation4], %s22
      %s24 = sshll.u32 [#allocation3], 4
      %s25 = int_to_ptr.vmem [resolvable:$true] %s24
      %30 = dma.hbm_to_vmem [thread:$0]  %s0, 1024, %s25, [#allocation4], 128, 128, 8
    $region5: #{tpu_custom_call.1} parent=1 // pred_fallthru
      _
    // Predicated region
    $region6: #{tpu_custom_call.1} parent=1 // pred_check
      _
    $region7: #{tpu_custom_call.1} parent=1 // pred_check_branch
      %32 = sbr.rel (0) target = $region9
    $region8: #{tpu_custom_call.1} parent=1 // pred_region
      %s34 = ssub.s32 128, 128
      %35 = vsyncadd [#allocation6], %s34
      %38 = dma.hbm_to_smem %s1, 128, [#allocation8], [#allocation6]
    $region9: #{tpu_custom_call.1} parent=1 // pred_fallthru
      _
    // Predicated region
    $region10: #{tpu_custom_call.1} parent=1 // pred_check
      _
    $region11: #{tpu_custom_call.1} parent=1 // pred_check_branch
      %40 = sbr.rel (0) target = $region13
    $region12: #{tpu_custom_call.1} parent=1 // pred_region
      %s42 = ssub.s32 16, 16
      %43 = vsyncadd [#allocation7], %s42
      %s45 = sshll.u32 %s2, 4
      %s46 = int_to_ptr.vmem [resolvable:$true] %s45
      %48 = dma.vmem_to_smem %s46, 16, [#allocation9], [#allocation7]
    $region13: #{tpu_custom_call.1} parent=1 // pred_fallthru
      _
    // Predicated region
    $region14: #{tpu_custom_call.1} parent=1 // pred_check
      _
    $region15: #{tpu_custom_call.1} parent=1 // pred_check_branch
      %50 = sbr.rel (0) target = $region17
    $region16: #{tpu_custom_call.1} parent=1 // pred_region
      %s52 = ssub.s32 64, 64
      %53 = vsyncadd [#allocation11], %s52
      %s55 = sshll.u32 %s3, 4
      %s56 = int_to_ptr.vmem [resolvable:$true] %s55
      %58 = dma.vmem_to_smem %s56, 64, [#allocation10], [#allocation11]
    $region17: #{tpu_custom_call.1} parent=1 // pred_fallthru
      _
    // Predicated region
    $region18: #{tpu_custom_call.1} parent=1 // pred_check
      _
    $region19: #{tpu_custom_call.1} parent=1 // pred_check_branch
      %60 = sbr.rel (0) target = $region21
    $region20: #{tpu_custom_call.1} parent=1 // pred_region
      %s62 = ssub.s32 16, 16
      %63 = vsyncadd [#allocation11], %s62
      %s65 = sshll.u32 %s4, 4
      %s66 = int_to_ptr.vmem [resolvable:$true] %s65
      %68 = dma.vmem_to_smem %s66, 16, [#allocation12], [#allocation11]
    $region21: #{tpu_custom_call.1} parent=1 // pred_fallthru
      _
    // Predicated region
    $region22: #{tpu_custom_call.1} parent=1 // pred_check
      _
    $region23: #{tpu_custom_call.1} parent=1 // pred_check_branch
      %70 = sbr.rel (0) target = $region25
    $region24: #{tpu_custom_call.1} parent=1 // pred_region
      %s72 = ssub.s32 16, 16
      %73 = vsyncadd [#allocation14], %s72
      %s75 = sshll.u32 %s5, 4
      %s76 = int_to_ptr.vmem [resolvable:$true] %s75
      %78 = dma.vmem_to_smem %s76, 16, [#allocation13], [#allocation14]
    $region25: #{tpu_custom_call.1} parent=1 // pred_fallthru
      _
    // Predicated region
    $region26: #{tpu_custom_call.1} parent=1 // pred_check
      _
    $region27: #{tpu_custom_call.1} parent=1 // pred_check_branch
      %80 = sbr.rel (0) target = $region29
    $region28: #{tpu_custom_call.1} parent=1 // pred_region
      _
    $region29: #{tpu_custom_call.1} parent=1 // pred_fallthru
      _
    // Predicated region
    $region30: #{tpu_custom_call.1} parent=1 // pred_check
      _
    $region31: #{tpu_custom_call.1} parent=1 // pred_check_branch
      %82 = sbr.rel (0) target = $region33
    $region32: #{tpu_custom_call.1} parent=1 // pred_region
      %83 = dma.done [#allocation4], 1024
    $region33: #{tpu_custom_call.1} parent=1 // pred_fallthru
      _
    // Predicated region
    $region34: #{tpu_custom_call.1} parent=1 // pred_check
      _
    $region35: #{tpu_custom_call.1} parent=1 // pred_check_branch
      %85 = sbr.rel (0) target = $region37
    $region36: #{tpu_custom_call.1} parent=1 // pred_region
      %86 = dma.done [#allocation6], 128
    $region37: #{tpu_custom_call.1} parent=1 // pred_fallthru
      _
    // Predicated region
    $region38: #{tpu_custom_call.1} parent=1 // pred_check
      _
    $region39: #{tpu_custom_call.1} parent=1 // pred_check_branch
      %88 = sbr.rel (0) target = $region41
    $region40: #{tpu_custom_call.1} parent=1 // pred_region
      %89 = dma.done [#allocation7], 16
    $region41: #{tpu_custom_call.1} parent=1 // pred_fallthru
      _
    // Predicated region
    $region42: #{tpu_custom_call.1} parent=1 // pred_check
      _
    $region43: #{tpu_custom_call.1} parent=1 // pred_check_branch
      %91 = sbr.rel (0) target = $region45
    $region44: #{tpu_custom_call.1} parent=1 // pred_region
      %92 = dma.done [#allocation11], 64
    $region45: #{tpu_custom_call.1} parent=1 // pred_fallthru
      _
    // Predicated region
    $region46: #{tpu_custom_call.1} parent=1 // pred_check
      _
    $region47: #{tpu_custom_call.1} parent=1 // pred_check_branch
      %94 = sbr.rel (0) target = $region49
    $region48: #{tpu_custom_call.1} parent=1 // pred_region
      %95 = dma.done [#allocation11], 16
    $region49: #{tpu_custom_call.1} parent=1 // pred_fallthru
      _
    // Predicated region
    $region50: #{tpu_custom_call.1} parent=1 // pred_check
      _
    $region51: #{tpu_custom_call.1} parent=1 // pred_check_branch
      %97 = sbr.rel (0) target = $region53
    $region52: #{tpu_custom_call.1} parent=1 // pred_region
      %98 = dma.done [#allocation14], 16
    $region53: #{tpu_custom_call.1} parent=1 // pred_fallthru
      _
    %99 = sfence
    %v100 = vld [vmem:[#allocation3] sm:$0xff]
    %s101 = sadd.s32 0, 8
    %s102 = scalar_lea.vmem [#allocation3], %s101
    %v103 = vld [vmem:[%s102] sm:$0xff]
    %s104 = sadd.s32 0, 16
    %s105 = scalar_lea.vmem [#allocation3], %s104
    %v106 = vld [vmem:[%s105] sm:$0xff]
    %s107 = sadd.s32 0, 24
    %s108 = scalar_lea.vmem [#allocation3], %s107
    %v109 = vld [vmem:[%s108] sm:$0xff]
    %s110 = sadd.s32 0, 32
    %s111 = scalar_lea.vmem [#allocation3], %s110
    %v112 = vld [vmem:[%s111] sm:$0xff]
    %s113 = sadd.s32 0, 40
    %s114 = scalar_lea.vmem [#allocation3], %s113
    %v115 = vld [vmem:[%s114] sm:$0xff]
    %s116 = sadd.s32 0, 48
    %s117 = scalar_lea.vmem [#allocation3], %s116
    %v118 = vld [vmem:[%s117] sm:$0xff]
    %s119 = sadd.s32 0, 56
    %s120 = scalar_lea.vmem [#allocation3], %s119
    %v121 = vld [vmem:[%s120] sm:$0xff]
    %s122 = sld [smem:[#allocation8]]
    %v123 = vstv %s122
    %v124 = vmul.f32 %v100, %v123
    %s125 = sld [smem:[#allocation8 + $0x1]]
    %v126 = vstv %s125
    %v127 = vmul.f32 %v103, %v126
    %v128 = vadd.f32 %v124, %v127
    %s129 = sld [smem:[#allocation8 + $0x2]]
    %v130 = vstv %s129
    %v131 = vmul.f32 %v106, %v130
    %v132 = vadd.f32 %v128, %v131
    %s133 = sld [smem:[#allocation8 + $0x3]]
    %v134 = vstv %s133
    %v135 = vmul.f32 %v109, %v134
    %v136 = vadd.f32 %v132, %v135
    %s137 = sld [smem:[#allocation8 + $0x4]]
    %v138 = vstv %s137
    %v139 = vmul.f32 %v112, %v138
    %v140 = vadd.f32 %v136, %v139
    %s141 = sld [smem:[#allocation8 + $0x5]]
    %v142 = vstv %s141
    %v143 = vmul.f32 %v115, %v142
    %v144 = vadd.f32 %v140, %v143
    %s145 = sld [smem:[#allocation8 + $0x6]]
    %v146 = vstv %s145
    %v147 = vmul.f32 %v118, %v146
    %v148 = vadd.f32 %v144, %v147
    %s149 = sld [smem:[#allocation8 + $0x7]]
    %v150 = vstv %s149
    %v151 = vmul.f32 %v121, %v150
    %v152 = vadd.f32 %v148, %v151
    %s153 = sld [smem:[#allocation9]]
    %v154 = vstv %s153
    %v155 = vadd.f32 %v152, %v154
    %v156 = vmul.f32 %v155, 1.442695
    %v157 = vpow.pop %v156
    %v158 = vadd.f32 %v157, 1.0
    %v159 = vrcp.pop %v158
    %s160 = sld [smem:[#allocation8 + $0x80]]
    %v161 = vstv %s160
    %v162 = vmul.f32 %v100, %v161
    %s163 = sld [smem:[#allocation8 + $0x81]]
    %v164 = vstv %s163
    %v165 = vmul.f32 %v103, %v164
    %v166 = vadd.f32 %v162, %v165
    %s167 = sld [smem:[#allocation8 + $0x82]]
    %v168 = vstv %s167
    %v169 = vmul.f32 %v106, %v168
    %v170 = vadd.f32 %v166, %v169
    %s171 = sld [smem:[#allocation8 + $0x83]]
    %v172 = vstv %s171
    %v173 = vmul.f32 %v109, %v172
    %v174 = vadd.f32 %v170, %v173
    %s175 = sld [smem:[#allocation8 + $0x84]]
    %v176 = vstv %s175
    %v177 = vmul.f32 %v112, %v176
    %v178 = vadd.f32 %v174, %v177
    %s179 = sld [smem:[#allocation8 + $0x85]]
    %v180 = vstv %s179
    %v181 = vmul.f32 %v115, %v180
    %v182 = vadd.f32 %v178, %v181
    %s183 = sld [smem:[#allocation8 + $0x86]]
    %v184 = vstv %s183
    %v185 = vmul.f32 %v118, %v184
    %v186 = vadd.f32 %v182, %v185
    %s187 = sld [smem:[#allocation8 + $0x87]]
    %v188 = vstv %s187
    %v189 = vmul.f32 %v121, %v188
    %v190 = vadd.f32 %v186, %v189
    %s191 = sld [smem:[#allocation9 + $0x1]]
    %v192 = vstv %s191
    %v193 = vadd.f32 %v190, %v192
    %v194 = vmul.f32 %v193, 1.442695
    %v195 = vpow.pop %v194
    %v196 = vadd.f32 %v195, 1.0
    %v197 = vrcp.pop %v196
    %s198 = sld [smem:[#allocation8 + $0x100]]
    %v199 = vstv %s198
    %v200 = vmul.f32 %v100, %v199
    %s201 = sld [smem:[#allocation8 + $0x101]]
    %v202 = vstv %s201
    %v203 = vmul.f32 %v103, %v202
    %v204 = vadd.f32 %v200, %v203
    %s205 = sld [smem:[#allocation8 + $0x102]]
    %v206 = vstv %s205
    %v207 = vmul.f32 %v106, %v206
    %v208 = vadd.f32 %v204, %v207
    %s209 = sld [smem:[#allocation8 + $0x103]]
    %v210 = vstv %s209
    %v211 = vmul.f32 %v109, %v210
    %v212 = vadd.f32 %v208, %v211
    %s213 = sld [smem:[#allocation8 + $0x104]]
    %v214 = vstv %s213
    %v215 = vmul.f32 %v112, %v214
    %v216 = vadd.f32 %v212, %v215
    %s217 = sld [smem:[#allocation8 + $0x105]]
    %v218 = vstv %s217
    %v219 = vmul.f32 %v115, %v218
    %v220 = vadd.f32 %v216, %v219
    %s221 = sld [smem:[#allocation8 + $0x106]]
    %v222 = vstv %s221
    %v223 = vmul.f32 %v118, %v222
    %v224 = vadd.f32 %v220, %v223
    %s225 = sld [smem:[#allocation8 + $0x107]]
    %v226 = vstv %s225
    %v227 = vmul.f32 %v121, %v226
    %v228 = vadd.f32 %v224, %v227
    %s229 = sld [smem:[#allocation9 + $0x2]]
    %v230 = vstv %s229
    %v231 = vadd.f32 %v228, %v230
    %v232 = vmul.f32 %v231, 1.442695
    %v233 = vpow.pop %v232
    %v234 = vadd.f32 %v233, 1.0
    %v235 = vrcp.pop %v234
    %s236 = sld [smem:[#allocation8 + $0x180]]
    %v237 = vstv %s236
    %v238 = vmul.f32 %v100, %v237
    %s239 = sld [smem:[#allocation8 + $0x181]]
    %v240 = vstv %s239
    %v241 = vmul.f32 %v103, %v240
    %v242 = vadd.f32 %v238, %v241
    %s243 = sld [smem:[#allocation8 + $0x182]]
    %v244 = vstv %s243
    %v245 = vmul.f32 %v106, %v244
    %v246 = vadd.f32 %v242, %v245
    %s247 = sld [smem:[#allocation8 + $0x183]]
    %v248 = vstv %s247
    %v249 = vmul.f32 %v109, %v248
    %v250 = vadd.f32 %v246, %v249
    %s251 = sld [smem:[#allocation8 + $0x184]]
    %v252 = vstv %s251
    %v253 = vmul.f32 %v112, %v252
    %v254 = vadd.f32 %v250, %v253
    %s255 = sld [smem:[#allocation8 + $0x185]]
    %v256 = vstv %s255
    %v257 = vmul.f32 %v115, %v256
    %v258 = vadd.f32 %v254, %v257
    %s259 = sld [smem:[#allocation8 + $0x186]]
    %v260 = vstv %s259
    %v261 = vmul.f32 %v118, %v260
    %v262 = vadd.f32 %v258, %v261
    %s263 = sld [smem:[#allocation8 + $0x187]]
    %v264 = vstv %s263
    %v265 = vmul.f32 %v121, %v264
    %v266 = vadd.f32 %v262, %v265
    %s267 = sld [smem:[#allocation9 + $0x3]]
    %v268 = vstv %s267
    %v269 = vadd.f32 %v266, %v268
    %v270 = vmul.f32 %v269, 1.442695
    %v271 = vpow.pop %v270
    %v272 = vadd.f32 %v271, 1.0
    %v273 = vrcp.pop %v272
    %s274 = sld [smem:[#allocation8 + $0x200]]
    %v275 = vstv %s274
    %v276 = vmul.f32 %v100, %v275
    %s277 = sld [smem:[#allocation8 + $0x201]]
    %v278 = vstv %s277
    %v279 = vmul.f32 %v103, %v278
    %v280 = vadd.f32 %v276, %v279
    %s281 = sld [smem:[#allocation8 + $0x202]]
    %v282 = vstv %s281
    %v283 = vmul.f32 %v106, %v282
    %v284 = vadd.f32 %v280, %v283
    %s285 = sld [smem:[#allocation8 + $0x203]]
    %v286 = vstv %s285
    %v287 = vmul.f32 %v109, %v286
    %v288 = vadd.f32 %v284, %v287
    %s289 = sld [smem:[#allocation8 + $0x204]]
    %v290 = vstv %s289
    %v291 = vmul.f32 %v112, %v290
    %v292 = vadd.f32 %v288, %v291
    %s293 = sld [smem:[#allocation8 + $0x205]]
    %v294 = vstv %s293
    %v295 = vmul.f32 %v115, %v294
    %v296 = vadd.f32 %v292, %v295
    %s297 = sld [smem:[#allocation8 + $0x206]]
    %v298 = vstv %s297
    %v299 = vmul.f32 %v118, %v298
    %v300 = vadd.f32 %v296, %v299
    %s301 = sld [smem:[#allocation8 + $0x207]]
    %v302 = vstv %s301
    %v303 = vmul.f32 %v121, %v302
    %v304 = vadd.f32 %v300, %v303
    %s305 = sld [smem:[#allocation9 + $0x4]]
    %v306 = vstv %s305
    %v307 = vadd.f32 %v304, %v306
    %v308 = vmul.f32 %v307, 1.442695
    %v309 = vpow.pop %v308
    %v310 = vadd.f32 %v309, 1.0
    %v311 = vrcp.pop %v310
    %s312 = sld [smem:[#allocation8 + $0x280]]
    %v313 = vstv %s312
    %v314 = vmul.f32 %v100, %v313
    %s315 = sld [smem:[#allocation8 + $0x281]]
    %v316 = vstv %s315
    %v317 = vmul.f32 %v103, %v316
    %v318 = vadd.f32 %v314, %v317
    %s319 = sld [smem:[#allocation8 + $0x282]]
    %v320 = vstv %s319
    %v321 = vmul.f32 %v106, %v320
    %v322 = vadd.f32 %v318, %v321
    %s323 = sld [smem:[#allocation8 + $0x283]]
    %v324 = vstv %s323
    %v325 = vmul.f32 %v109, %v324
    %v326 = vadd.f32 %v322, %v325
    %s327 = sld [smem:[#allocation8 + $0x284]]
    %v328 = vstv %s327
    %v329 = vmul.f32 %v112, %v328
    %v330 = vadd.f32 %v326, %v329
    %s331 = sld [smem:[#allocation8 + $0x285]]
    %v332 = vstv %s331
    %v333 = vmul.f32 %v115, %v332
    %v334 = vadd.f32 %v330, %v333
    %s335 = sld [smem:[#allocation8 + $0x286]]
    %v336 = vstv %s335
    %v337 = vmul.f32 %v118, %v336
    %v338 = vadd.f32 %v334, %v337
    %s339 = sld [smem:[#allocation8 + $0x287]]
    %v340 = vstv %s339
    %v341 = vmul.f32 %v121, %v340
    %v342 = vadd.f32 %v338, %v341
    %s343 = sld [smem:[#allocation9 + $0x5]]
    %v344 = vstv %s343
    %v345 = vadd.f32 %v342, %v344
    %v346 = vmul.f32 %v345, 1.442695
    %v347 = vpow.pop %v346
    %v348 = vadd.f32 %v347, 1.0
    %v349 = vrcp.pop %v348
    %s350 = sld [smem:[#allocation10]]
    %v351 = vstv %s350
    %v352 = vmul.f32 %v159, %v351
    %s353 = sld [smem:[#allocation10 + $0x1]]
    %v354 = vstv %s353
    %v355 = vmul.f32 %v197, %v354
    %v356 = vadd.f32 %v352, %v355
    %s357 = sld [smem:[#allocation10 + $0x2]]
    %v358 = vstv %s357
    %v359 = vmul.f32 %v235, %v358
    %v360 = vadd.f32 %v356, %v359
    %s361 = sld [smem:[#allocation10 + $0x3]]
    %v362 = vstv %s361
    %v363 = vmul.f32 %v273, %v362
    %v364 = vadd.f32 %v360, %v363
    %s365 = sld [smem:[#allocation10 + $0x4]]
    %v366 = vstv %s365
    %v367 = vmul.f32 %v311, %v366
    %v368 = vadd.f32 %v364, %v367
    %s369 = sld [smem:[#allocation10 + $0x5]]
    %v370 = vstv %s369
    %v371 = vmul.f32 %v349, %v370
    %v372 = vadd.f32 %v368, %v371
    %s373 = sld [smem:[#allocation12]]
    %v374 = vstv %s373
    %v375 = vadd.f32 %v372, %v374
    %v376 = vmul.f32 %v375, 1.442695
    %v377 = vpow.pop %v376
    %v378 = vadd.f32 %v377, 1.0
    %v379 = vrcp.pop %v378
    %s380 = sld [smem:[#allocation10 + $0x80]]
    %v381 = vstv %s380
    %v382 = vmul.f32 %v159, %v381
    %s383 = sld [smem:[#allocation10 + $0x81]]
    %v384 = vstv %s383
    %v385 = vmul.f32 %v197, %v384
    %v386 = vadd.f32 %v382, %v385
    %s387 = sld [smem:[#allocation10 + $0x82]]
    %v388 = vstv %s387
    %v389 = vmul.f32 %v235, %v388
    %v390 = vadd.f32 %v386, %v389
    %s391 = sld [smem:[#allocation10 + $0x83]]
    %v392 = vstv %s391
    %v393 = vmul.f32 %v273, %v392
    %v394 = vadd.f32 %v390, %v393
    %s395 = sld [smem:[#allocation10 + $0x84]]
    %v396 = vstv %s395
    %v397 = vmul.f32 %v311, %v396
    %v398 = vadd.f32 %v394, %v397
    %s399 = sld [smem:[#allocation10 + $0x85]]
    %v400 = vstv %s399
    %v401 = vmul.f32 %v349, %v400
    %v402 = vadd.f32 %v398, %v401
    %s403 = sld [smem:[#allocation12 + $0x1]]
    %v404 = vstv %s403
    %v405 = vadd.f32 %v402, %v404
    %v406 = vmul.f32 %v405, 1.442695
    %v407 = vpow.pop %v406
    %v408 = vadd.f32 %v407, 1.0
    %v409 = vrcp.pop %v408
    %s410 = sld [smem:[#allocation10 + $0x100]]
    %v411 = vstv %s410
    %v412 = vmul.f32 %v159, %v411
    %s413 = sld [smem:[#allocation10 + $0x101]]
    %v414 = vstv %s413
    %v415 = vmul.f32 %v197, %v414
    %v416 = vadd.f32 %v412, %v415
    %s417 = sld [smem:[#allocation10 + $0x102]]
    %v418 = vstv %s417
    %v419 = vmul.f32 %v235, %v418
    %v420 = vadd.f32 %v416, %v419
    %s421 = sld [smem:[#allocation10 + $0x103]]
    %v422 = vstv %s421
    %v423 = vmul.f32 %v273, %v422
    %v424 = vadd.f32 %v420, %v423
    %s425 = sld [smem:[#allocation10 + $0x104]]
    %v426 = vstv %s425
    %v427 = vmul.f32 %v311, %v426
    %v428 = vadd.f32 %v424, %v427
    %s429 = sld [smem:[#allocation10 + $0x105]]
    %v430 = vstv %s429
    %v431 = vmul.f32 %v349, %v430
    %v432 = vadd.f32 %v428, %v431
    %s433 = sld [smem:[#allocation12 + $0x2]]
    %v434 = vstv %s433
    %v435 = vadd.f32 %v432, %v434
    %v436 = vmul.f32 %v435, 1.442695
    %v437 = vpow.pop %v436
    %v438 = vadd.f32 %v437, 1.0
    %v439 = vrcp.pop %v438
    %s440 = sld [smem:[#allocation10 + $0x180]]
    %v441 = vstv %s440
    %v442 = vmul.f32 %v159, %v441
    %s443 = sld [smem:[#allocation10 + $0x181]]
    %v444 = vstv %s443
    %v445 = vmul.f32 %v197, %v444
    %v446 = vadd.f32 %v442, %v445
    %s447 = sld [smem:[#allocation10 + $0x182]]
    %v448 = vstv %s447
    %v449 = vmul.f32 %v235, %v448
    %v450 = vadd.f32 %v446, %v449
    %s451 = sld [smem:[#allocation10 + $0x183]]
    %v452 = vstv %s451
    %v453 = vmul.f32 %v273, %v452
    %v454 = vadd.f32 %v450, %v453
    %s455 = sld [smem:[#allocation10 + $0x184]]
    %v456 = vstv %s455
    %v457 = vmul.f32 %v311, %v456
    %v458 = vadd.f32 %v454, %v457
    %s459 = sld [smem:[#allocation10 + $0x185]]
    %v460 = vstv %s459
    %v461 = vmul.f32 %v349, %v460
    %v462 = vadd.f32 %v458, %v461
    %s463 = sld [smem:[#allocation12 + $0x3]]
    %v464 = vstv %s463
    %v465 = vadd.f32 %v462, %v464
    %v466 = vmul.f32 %v465, 1.442695
    %v467 = vpow.pop %v466
    %v468 = vadd.f32 %v467, 1.0
    %v469 = vrcp.pop %v468
    %s470 = sld [smem:[#allocation13]]
    %v471 = vstv %s470
    %v472 = vmul.f32 %v379, %v471
    %s473 = sld [smem:[#allocation13 + $0x1]]
    %v474 = vstv %s473
    %v475 = vmul.f32 %v409, %v474
    %v476 = vadd.f32 %v472, %v475
    %s477 = sld [smem:[#allocation13 + $0x2]]
    %v478 = vstv %s477
    %v479 = vmul.f32 %v439, %v478
    %v480 = vadd.f32 %v476, %v479
    %s481 = sld [smem:[#allocation13 + $0x3]]
    %v482 = vstv %s481
    %v483 = vmul.f32 %v469, %v482
    %v484 = vadd.f32 %v480, %v483
    %s485 = sld [smem:[#allocation2]]
    %v486 = vstv %s485
    %v487 = vadd.f32 %v484, %v486
    %v488 = vmul.f32 %v487, 1.442695
    %v489 = vpow.pop %v488
    %v490 = vadd.f32 %v489, 1.0
    %v491 = vrcp.pop %v490
    %492 = vst [vmem:[#allocation15] sm:$0xff] %v491
    // Predicated region
    $region54: #{tpu_custom_call.1} parent=1 // pred_check
      _
    $region55: #{tpu_custom_call.1} parent=1 // pred_check_branch
      %494 = sbr.rel (0) target = $region57
    $region56: #{tpu_custom_call.1} parent=1 // pred_region
      %s496 = ssub.s32 128, 128
      %497 = vsyncadd [#allocation5], %s496
      %s499 = sshll.u32 [#allocation15], 4
      %s500 = int_to_ptr.vmem [resolvable:$true] %s499
      %502 = dma.vmem_to_hbm [thread:$0]  %s500, 128, %s7, [#allocation5]
    $region57: #{tpu_custom_call.1} parent=1 // pred_fallthru
      _
    // Predicated region
    $region58: #{tpu_custom_call.1} parent=1 // pred_check
      _
    $region59: #{tpu_custom_call.1} parent=1 // pred_check_branch
      %504 = sbr.rel (0) target = $region61
    $region60: #{tpu_custom_call.1} parent=1 // pred_region
      %505 = dma.done [#allocation5], 128
    $region61: #{tpu_custom_call.1} parent=1 // pred_fallthru
      _
    %506 = vsyncpa [#allocation4], 1
    %507 = vsyncpa [#allocation5], 1
    %508 = vsyncpa [#allocation6], 1
    %509 = vsyncpa [#allocation7], 1
    %510 = vsyncpa [#allocation11], 1
    %511 = vsyncpa [#allocation14], 1

</llo_original>
